<compile_context>
chip_gen: v7x
topology: tpu7x:2x2x1
jax: 0.10.0
libtpu: 0.0.40
codegen_flags: <defaults>
</compile_context>

<pallas_src>
import functools

import jax
import jax.numpy as jnp
from jax import lax
from jax.experimental import pallas as pl
from jax.experimental.pallas import tpu as pltpu

F32 = jnp.float32


def _vq_kernel(z_ref, emb_ref, esq_ref, col_ref,
               zq_ref, d_ref, oh_ref, idx_ref, ohsum_ref, sse_ref,
               *, total_rows, needs_mask, mm_dtype):
    z = z_ref[...]                                   # (TN, e_dim) f32
    emb = emb_ref[...]                               # (n_e, e_dim) f32
    tn = z.shape[0]
    n_e = emb.shape[0]

    # squared L2 distance: ||z||^2 + ||e||^2 - 2 z.E^T
    # (codebook shipped once; contraction over e_dim of both operands, no transposed copy)
    z_sq = jnp.sum(z * z, axis=1, keepdims=True)                         # (TN, 1)
    cross = lax.dot_general(z.astype(mm_dtype), emb.astype(mm_dtype),
                            (((1,), (1,)), ((), ())),
                            preferred_element_type=F32)                  # (TN, n_e) MXU
    d = z_sq + esq_ref[...] - 2.0 * cross
    d_ref[...] = d.astype(d_ref.dtype)

    # first-occurrence argmin (torch.argmin tie-break): lane min, then smallest
    # column index achieving it.  Column iota is a (1, n_e) constant input.
    colb = jnp.broadcast_to(col_ref[...], d.shape)                       # (TN, n_e)
    d_min = jnp.min(d, axis=1, keepdims=True)                            # (TN, 1)
    idx_f = jnp.min(jnp.where(d == d_min, colb, jnp.float32(n_e)),
                    axis=1, keepdims=True)                               # (TN, 1)
    idx_ref[...] = idx_f.astype(jnp.int32)

    one_hot = (colb == idx_f).astype(F32)                                # (TN, n_e)
    oh_ref[...] = one_hot.astype(oh_ref.dtype)

    # codebook lookup as a wide MXU matmul (contraction over n_e, no gather)
    z_q = jnp.dot(one_hot, emb, preferred_element_type=F32)              # (TN, e_dim)
    zq_ref[...] = z_q

    # in-kernel partial reductions so the XLA epilogue only touches tiny tensors
    if needs_mask:
        row = lax.broadcasted_iota(jnp.int32, (tn, 1), 0) + pl.program_id(0) * tn
        valid = (row < total_rows).astype(F32)                           # (TN, 1)
        oh_m = one_hot * valid
        err = (z_q - z) * valid
    else:
        oh_m = one_hot
        err = z_q - z
    ohsum_ref[...] = jnp.sum(oh_m, axis=0, keepdims=True).reshape(1, 1, n_e)
    sse_ref[...] = jnp.sum(err * err, axis=0, keepdims=True).reshape(1, 1, -1)


def _pick_tile(N, e_dim, n_e, requested, vmem_budget):
    """Largest 8-multiple row tile whose double-buffered blocks fit the budget."""
    tn = max(8, min(int(requested), ((N + 7) // 8) * 8))
    tn = ((tn + 7) // 8) * 8

    def need(t):
        stream = t * (2 * e_dim + 2 * n_e + 1) * 4        # z, z_q, d, one_hot, idx
        red = (n_e + e_dim) * 4                           # partial-sum blocks
        consts = (n_e * e_dim + 2 * n_e) * 4              # codebook, ||e||^2, iota
        return 2 * (stream + red) + 2 * consts + (2 << 20)

    while tn > 8 and need(tn) > vmem_budget:
        tn = max(8, ((tn // 2 + 7) // 8) * 8)
    return tn, need(tn)


def vector_quantizer_forward(z, embedding, *, beta, tile_n=512,
                             d_dtype=F32, one_hot_dtype=F32,
                             matmul_dtype=F32, vmem_budget=40 << 20):
    """Forward pass of VectorQuantizer.

    z:         (B, e_dim, H, W)  NCHW
    embedding: (n_e, e_dim)      codebook
    returns (z_q, loss, (perplexity, one_hot, indices, d)) matching the PyTorch module.
    """
    B, C, H, W = z.shape
    n_e, e_dim = embedding.shape
    assert C == e_dim, "channel dim must equal e_dim"
    N = B * H * W

    # permute(0,2,3,1).view(-1, e_dim) -- layout plumbing kept in XLA (see TODO above).
    z_flat = jnp.transpose(z, (0, 2, 3, 1)).reshape(N, e_dim).astype(F32)

    TN, vmem_needed = _pick_tile(N, e_dim, n_e, tile_n, vmem_budget)
    num_tiles = pl.cdiv(N, TN)
    padded_N = num_tiles * TN
    z_flat_p = (jnp.pad(z_flat, ((0, padded_N - N), (0, 0)))
                if padded_N != N else z_flat)

    emb = embedding.astype(F32)                               # (n_e, e_dim)
    e_sq = jnp.sum(emb * emb, axis=1)[None, :]                # (1, n_e) grid-invariant
    col = lax.iota(F32, n_e)[None, :]                         # (1, n_e) column indices

    kernel = functools.partial(_vq_kernel,
                               total_rows=N,
                               needs_mask=(padded_N != N),
                               mm_dtype=matmul_dtype)

    row_ed = pl.BlockSpec((TN, e_dim), lambda i: (i, 0))
    row_ne = pl.BlockSpec((TN, n_e), lambda i: (i, 0))
    row_i1 = pl.BlockSpec((TN, 1), lambda i: (i, 0))
    const2 = lambda s: pl.BlockSpec(s, lambda i: (0, 0))
    tile3 = lambda s: pl.BlockSpec(s, lambda i: (i, 0, 0))

    vmem_limit = int(min(max(vmem_needed, 16 << 20), 64 << 20))

    outs = pl.pallas_call(
        kernel,
        out_shape=[
            jax.ShapeDtypeStruct((padded_N, e_dim), F32),            # z_q (flat)
            jax.ShapeDtypeStruct((padded_N, n_e), d_dtype),          # d
            jax.ShapeDtypeStruct((padded_N, n_e), one_hot_dtype),    # one_hot
            jax.ShapeDtypeStruct((padded_N, 1), jnp.int32),          # indices
            jax.ShapeDtypeStruct((num_tiles, 1, n_e), F32),          # one_hot col-sums / tile
            jax.ShapeDtypeStruct((num_tiles, 1, e_dim), F32),        # (z_q - z)^2 sums / tile
        ],
        grid_spec=pltpu.PrefetchScalarGridSpec(
            num_scalar_prefetch=0,
            grid=(num_tiles,),
            in_specs=[
                row_ed,                    # z tile
                const2((n_e, e_dim)),      # codebook (single copy)
                const2((1, n_e)),          # ||e||^2
                const2((1, n_e)),          # column iota
            ],
            out_specs=[row_ed, row_ne, row_ne, row_i1,
                       tile3((1, 1, n_e)), tile3((1, 1, e_dim))],
        ),
        compiler_params=pltpu.CompilerParams(
            dimension_semantics=("parallel",),
            vmem_limit_bytes=vmem_limit,
        ),
    )(z_flat_p, emb, e_sq, col)

    z_q_p, d_p, oh_p, idx_p, oh_sums, sse_parts = outs

    z_q_flat = z_q_p[:N]
    d = d_p[:N]
    one_hot = oh_p[:N]
    indices = idx_p[:N]                                       # (N, 1) int32

    # tiny epilogues from in-kernel partial sums (no large HBM re-reads)
    mse = jnp.sum(sse_parts) / (N * e_dim)
    loss = (1.0 + beta) * mse                                 # forward value of cb + beta*commit
    e_mean = jnp.sum(oh_sums, axis=0).reshape(n_e) / N
    perplexity = jnp.exp(-jnp.sum(e_mean * jnp.log(e_mean + 1e-10)))

    # straight-through estimator: forward value is z_q; back to NCHW
    z_q = z_q_flat.reshape(B, H, W, C).transpose(0, 3, 1, 2)

    return z_q, loss, (perplexity, one_hot, indices, d)


# ---------------- Pure-JAX reference (mirrors the PyTorch forward) ----------------
def reference_forward(z, embedding, beta):
    B, C, H, W = z.shape
    n_e, e_dim = embedding.shape
    z_perm = jnp.transpose(z, (0, 2, 3, 1))
    z_flat = z_perm.reshape(-1, e_dim)
    d = (jnp.sum(z_flat ** 2, axis=1, keepdims=True)
         + jnp.sum(embedding ** 2, axis=1)[None, :]
         - 2.0 * jnp.matmul(z_flat, embedding.T,
                            precision=lax.Precision.HIGHEST))
    idx = jnp.argmin(d, axis=1)
    z_q_flat = embedding[idx]
    one_hot = jax.nn.one_hot(idx, n_e, dtype=F32)
    mse = jnp.mean((z_q_flat - z_flat) ** 2)
    loss = mse + beta * mse
    e_mean = one_hot.mean(axis=0)
    perplexity = jnp.exp(-jnp.sum(e_mean * jnp.log(e_mean + 1e-10)))
    z_q = z_q_flat.reshape(B, H, W, C).transpose(0, 3, 1, 2)
    return z_q, loss, (perplexity, one_hot, idx[:, None].astype(jnp.int32), d)


if __name__ == "__main__":
    B, C, H, W = 2, 32, 8, 8      # e_dim = C = 32, N = B*H*W = 128
    N_E = 128                     # codebook size
    BETA = 0.25

    key = jax.random.PRNGKey(0)
    kz, ke = jax.random.split(key)
    z = jax.random.normal(kz, (B, C, H, W), F32)
    embedding = jax.random.normal(ke, (N_E, C), F32)

    rz_q, rloss, (rppl, roh, ridx, rd) = reference_forward(z, embedding, BETA)

    # tile_n=512 -> single full tile (no padding); tile_n=40 -> multi-tile + padded
    # rows, exercising the in-kernel masking of the partial reductions.
    for tn in (512, 40):
        out = jax.block_until_ready(
            vector_quantizer_forward(z, embedding, beta=BETA, tile_n=tn))
        z_q, loss, (ppl, one_hot, idx, d) = out

        assert z_q.shape == (B, C, H, W)
        assert d.shape == (B * H * W, N_E)
        assert one_hot.shape == (B * H * W, N_E)
        assert idx.shape == (B * H * W, 1)

        assert jnp.allclose(d, rd, atol=1e-2, rtol=1e-3), f"distance mismatch (tn={tn})"
        assert jnp.array_equal(idx, ridx), f"argmin index mismatch (tn={tn})"
        assert jnp.array_equal(one_hot, roh), f"one-hot mismatch (tn={tn})"
        assert jnp.allclose(z_q, rz_q, atol=1e-3, rtol=1e-3), f"z_q mismatch (tn={tn})"
        assert jnp.allclose(loss, rloss, atol=1e-4, rtol=1e-4), f"loss mismatch (tn={tn})"
        assert jnp.allclose(ppl, rppl, atol=1e-3, rtol=1e-3), f"perplexity mismatch (tn={tn})"

    print("KERNEL_OK")
</pallas_src>

<mosaic_0001>
module attributes {stable_mosaic.version = 11 : i64} {
  func.func @_vq_kernel(%arg0: i32, %arg1: memref<128x32xf32, #tpu.memory_space<vmem>>, %arg2: memref<128x32xf32, #tpu.memory_space<vmem>>, %arg3: memref<1x128xf32, #tpu.memory_space<vmem>>, %arg4: memref<1x128xf32, #tpu.memory_space<vmem>>, %arg5: memref<128x32xf32, #tpu.memory_space<vmem>>, %arg6: memref<128x128xf32, #tpu.memory_space<vmem>>, %arg7: memref<128x128xf32, #tpu.memory_space<vmem>>, %arg8: memref<128x1xi32, #tpu.memory_space<vmem>>, %arg9: memref<1x1x128xf32, #tpu.memory_space<vmem>>, %arg10: memref<1x1x32xf32, #tpu.memory_space<vmem>>) attributes {dimension_semantics = [#tpu.dimension_semantics<parallel>], iteration_bounds = array<i64: 1>, scalar_prefetch = 0 : i64, scratch_operands = 0 : i64, tpu.core_type = #tpu.core_type<tc>, window_params = [{transform_indices = @transform_0, window_bounds = array<i64: 128, 32>}, {pipeline_mode = #tpu.pipeline_mode<synchronous>, transform_indices = @transform_1, window_bounds = array<i64: 128, 32>}, {pipeline_mode = #tpu.pipeline_mode<synchronous>, transform_indices = @transform_2, window_bounds = array<i64: 1, 128>}, {pipeline_mode = #tpu.pipeline_mode<synchronous>, transform_indices = @transform_3, window_bounds = array<i64: 1, 128>}, {transform_indices = @transform_4, window_bounds = array<i64: 128, 32>}, {transform_indices = @transform_5, window_bounds = array<i64: 128, 128>}, {transform_indices = @transform_6, window_bounds = array<i64: 128, 128>}, {transform_indices = @transform_7, window_bounds = array<i64: 128, 1>}, {transform_indices = @transform_8, window_bounds = array<i64: 1, 1, 128>}, {transform_indices = @transform_9, window_bounds = array<i64: 1, 1, 32>}]} {
    %c0 = arith.constant 0 : index
    %c0_0 = arith.constant 0 : index
    %0 = vector.load %arg1[%c0, %c0_0] : memref<128x32xf32, #tpu.memory_space<vmem>>, vector<128x32xf32>
    %c0_1 = arith.constant 0 : index
    %c0_2 = arith.constant 0 : index
    %1 = vector.load %arg2[%c0_1, %c0_2] : memref<128x32xf32, #tpu.memory_space<vmem>>, vector<128x32xf32>
    %2 = arith.mulf %0, %0 : vector<128x32xf32>
    %cst = arith.constant dense<0.000000e+00> : vector<128xf32>
    %3 = vector.multi_reduction <add>, %2, %cst [1] : vector<128x32xf32> to vector<128xf32>
    %4 = vector.shape_cast %3 : vector<128xf32> to vector<128x1xf32>
    %cst_3 = arith.constant dense<0.000000e+00> : vector<128x128xf32>
    %5 = tpu.matmul %0, %1, %cst_3 {dimension_numbers = #tpu.dot_dimension_numbers<[1], [1], [0], [0], [0, 0, 1, 0], [], []>} : vector<128x32xf32>, vector<128x32xf32>, vector<128x128xf32> -> vector<128x128xf32>
    %c0_4 = arith.constant 0 : index
    %c0_5 = arith.constant 0 : index
    %6 = vector.load %arg3[%c0_4, %c0_5] : memref<1x128xf32, #tpu.memory_space<vmem>>, vector<1x128xf32>
    %7 = vector.broadcast %4 : vector<128x1xf32> to vector<128x128xf32>
    %8 = vector.broadcast %6 : vector<1x128xf32> to vector<128x128xf32>
    %9 = arith.addf %7, %8 : vector<128x128xf32>
    %cst_6 = arith.constant 2.000000e+00 : f32
    %10 = vector.broadcast %cst_6 : f32 to vector<128x128xf32>
    %11 = arith.mulf %10, %5 : vector<128x128xf32>
    %12 = arith.subf %9, %11 : vector<128x128xf32>
    %c0_7 = arith.constant 0 : index
    %c0_8 = arith.constant 0 : index
    %13 = vector.load %arg6[%c0_7, %c0_8] : memref<128x128xf32, #tpu.memory_space<vmem>>, vector<128x128xf32>
    tpu.vector_store %arg6[%c0_7, %c0_8], %12 {strides = array<i32>} : memref<128x128xf32, #tpu.memory_space<vmem>>, vector<128x128xf32>,
    %c0_9 = arith.constant 0 : index
    %c0_10 = arith.constant 0 : index
    %14 = vector.load %arg4[%c0_9, %c0_10] : memref<1x128xf32, #tpu.memory_space<vmem>>, vector<1x128xf32>
    %15 = vector.shape_cast %14 : vector<1x128xf32> to vector<1x128xf32>
    %16 = vector.broadcast %15 : vector<1x128xf32> to vector<128x128xf32>
    %cst_11 = arith.constant dense<0x7F800000> : vector<128xf32>
    %17 = vector.multi_reduction <minimumf>, %12, %cst_11 [1] : vector<128x128xf32> to vector<128xf32>
    %18 = vector.shape_cast %17 : vector<128xf32> to vector<128x1xf32>
    %19 = vector.broadcast %18 : vector<128x1xf32> to vector<128x128xf32>
    %20 = arith.cmpf oeq, %12, %19 : vector<128x128xf32>
    %cst_12 = arith.constant 1.280000e+02 : f32
    %21 = vector.broadcast %cst_12 : f32 to vector<128x128xf32>
    %22 = arith.select %20, %16, %21 : vector<128x128xi1>, vector<128x128xf32>
    %cst_13 = arith.constant dense<0x7F800000> : vector<128xf32>
    %23 = vector.multi_reduction <minimumf>, %22, %cst_13 [1] : vector<128x128xf32> to vector<128xf32>
    %24 = vector.shape_cast %23 : vector<128xf32> to vector<128x1xf32>
    %25 = arith.fptosi %24 : vector<128x1xf32> to vector<128x1xi32>
    %c0_14 = arith.constant 0 : index
    %c0_15 = arith.constant 0 : index
    %26 = vector.load %arg8[%c0_14, %c0_15] : memref<128x1xi32, #tpu.memory_space<vmem>>, vector<128x1xi32>
    tpu.vector_store %arg8[%c0_14, %c0_15], %25 {strides = array<i32>} : memref<128x1xi32, #tpu.memory_space<vmem>>, vector<128x1xi32>,
    %27 = vector.broadcast %24 : vector<128x1xf32> to vector<128x128xf32>
    %28 = arith.cmpf oeq, %16, %27 : vector<128x128xf32>
    %29 = arith.extui %28 : vector<128x128xi1> to vector<128x128xi32>
    %30 = arith.sitofp %29 : vector<128x128xi32> to vector<128x128xf32>
    %c0_16 = arith.constant 0 : index
    %c0_17 = arith.constant 0 : index
    %31 = vector.load %arg7[%c0_16, %c0_17] : memref<128x128xf32, #tpu.memory_space<vmem>>, vector<128x128xf32>
    tpu.vector_store %arg7[%c0_16, %c0_17], %30 {strides = array<i32>} : memref<128x128xf32, #tpu.memory_space<vmem>>, vector<128x128xf32>,
    %cst_18 = arith.constant dense<0.000000e+00> : vector<128x32xf32>
    %32 = tpu.matmul %30, %1, %cst_18 {dimension_numbers = #tpu.dot_dimension_numbers<[1], [0], [0], [1], [0, 0, 1, 1], [], []>} : vector<128x128xf32>, vector<128x32xf32>, vector<128x32xf32> -> vector<128x32xf32>
    %c0_19 = arith.constant 0 : index
    %c0_20 = arith.constant 0 : index
    %33 = vector.load %arg5[%c0_19, %c0_20] : memref<128x32xf32, #tpu.memory_space<vmem>>, vector<128x32xf32>
    tpu.vector_store %arg5[%c0_19, %c0_20], %32 {strides = array<i32>} : memref<128x32xf32, #tpu.memory_space<vmem>>, vector<128x32xf32>,
    %34 = arith.subf %32, %0 : vector<128x32xf32>
    %cst_21 = arith.constant dense<0.000000e+00> : vector<128xf32>
    %35 = vector.multi_reduction <add>, %30, %cst_21 [0] : vector<128x128xf32> to vector<128xf32>
    %36 = vector.shape_cast %35 : vector<128xf32> to vector<1x128xf32>
    %37 = vector.shape_cast %36 : vector<1x128xf32> to vector<1x1x128xf32>
    %c0_22 = arith.constant 0 : index
    %c0_23 = arith.constant 0 : index
    %c0_24 = arith.constant 0 : index
    %38 = vector.load %arg9[%c0_22, %c0_23, %c0_24] : memref<1x1x128xf32, #tpu.memory_space<vmem>>, vector<1x1x128xf32>
    tpu.vector_store %arg9[%c0_22, %c0_23, %c0_24], %37 {strides = array<i32>} : memref<1x1x128xf32, #tpu.memory_space<vmem>>, vector<1x1x128xf32>,
    %39 = arith.mulf %34, %34 : vector<128x32xf32>
    %cst_25 = arith.constant dense<0.000000e+00> : vector<32xf32>
    %40 = vector.multi_reduction <add>, %39, %cst_25 [0] : vector<128x32xf32> to vector<32xf32>
    %41 = vector.shape_cast %40 : vector<32xf32> to vector<1x32xf32>
    %42 = vector.shape_cast %41 : vector<1x32xf32> to vector<1x1x32xf32>
    %c0_26 = arith.constant 0 : index
    %c0_27 = arith.constant 0 : index
    %c0_28 = arith.constant 0 : index
    %43 = vector.load %arg10[%c0_26, %c0_27, %c0_28] : memref<1x1x32xf32, #tpu.memory_space<vmem>>, vector<1x1x32xf32>
    tpu.vector_store %arg10[%c0_26, %c0_27, %c0_28], %42 {strides = array<i32>} : memref<1x1x32xf32, #tpu.memory_space<vmem>>, vector<1x1x32xf32>,
    return
  }
  func.func @transform_0(%arg0: i32) -> (i32, i32) {
    %c0_i32 = arith.constant 0 : i32
    %c0_i32_0 = arith.constant 0 : i32
    return %arg0, %c0_i32 : i32, i32
  }
  func.func @transform_1(%arg0: i32) -> (i32, i32) {
    %c0_i32 = arith.constant 0 : i32
    %c0_i32_0 = arith.constant 0 : i32
    %c0_i32_1 = arith.constant 0 : i32
    return %c0_i32, %c0_i32_0 : i32, i32
  }
  func.func @transform_2(%arg0: i32) -> (i32, i32) {
    %c0_i32 = arith.constant 0 : i32
    %c0_i32_0 = arith.constant 0 : i32
    %c0_i32_1 = arith.constant 0 : i32
    return %c0_i32, %c0_i32_0 : i32, i32
  }
  func.func @transform_3(%arg0: i32) -> (i32, i32) {
    %c0_i32 = arith.constant 0 : i32
    %c0_i32_0 = arith.constant 0 : i32
    %c0_i32_1 = arith.constant 0 : i32
    return %c0_i32, %c0_i32_0 : i32, i32
  }
  func.func @transform_4(%arg0: i32) -> (i32, i32) {
    %c0_i32 = arith.constant 0 : i32
    %c0_i32_0 = arith.constant 0 : i32
    return %arg0, %c0_i32 : i32, i32
  }
  func.func @transform_5(%arg0: i32) -> (i32, i32) {
    %c0_i32 = arith.constant 0 : i32
    %c0_i32_0 = arith.constant 0 : i32
    return %arg0, %c0_i32 : i32, i32
  }
  func.func @transform_6(%arg0: i32) -> (i32, i32) {
    %c0_i32 = arith.constant 0 : i32
    %c0_i32_0 = arith.constant 0 : i32
    return %arg0, %c0_i32 : i32, i32
  }
  func.func @transform_7(%arg0: i32) -> (i32, i32) {
    %c0_i32 = arith.constant 0 : i32
    %c0_i32_0 = arith.constant 0 : i32
    return %arg0, %c0_i32 : i32, i32
  }
  func.func @transform_8(%arg0: i32) -> (i32, i32, i32) {
    %c0_i32 = arith.constant 0 : i32
    %c0_i32_0 = arith.constant 0 : i32
    %c0_i32_1 = arith.constant 0 : i32
    return %arg0, %c0_i32, %c0_i32_0 : i32, i32, i32
  }
  func.func @transform_9(%arg0: i32) -> (i32, i32, i32) {
    %c0_i32 = arith.constant 0 : i32
    %c0_i32_0 = arith.constant 0 : i32
    %c0_i32_1 = arith.constant 0 : i32
    return %arg0, %c0_i32, %c0_i32_0 : i32, i32, i32
  }
}

</mosaic_0001>

<llo_original>
// kernel: tpu_custom_call.1
$region0: #{tpu_custom_call.1}
  #allocation0 [shape = 'u32[]', space=smem, size = 0x4, offset = 0x4, fixed_abs, tag = 'smem constant byte address 0x4 - core index']
  #allocation1 [shape = 'u32[144,128]{1,0:T(1,128)}', space=vmem, size = 0x12000, scoped, tag = 'internal scratch']
  %s0 = inlined_call_operand.vmem [shape: f32[128,32], index: 0, kind: input, shape index: {}]
  %s1 = inlined_call_operand.vmem [shape: f32[128,32], index: 1, kind: input, shape index: {}]
  %s2 = inlined_call_operand.vmem [shape: f32[1,128], index: 2, kind: input, shape index: {}]
  %s3 = inlined_call_operand.vmem [shape: f32[1,128], index: 3, kind: input, shape index: {}]
  %s4 = inlined_call_operand.vmem [shape: f32[128,32], index: 4, kind: output, shape index: {0}]
  %s5 = inlined_call_operand.hbm [shape: f32[128,128], index: 5, kind: output, shape index: {1}]
  %s6 = inlined_call_operand.hbm [shape: f32[128,128], index: 6, kind: output, shape index: {2}]
  %s7 = inlined_call_operand.vmem [shape: s32[128,1], index: 7, kind: output, shape index: {3}]
  %s8 = inlined_call_operand.hbm [shape: f32[1,1,128], index: 8, kind: output, shape index: {4}]
  %s9 = inlined_call_operand.hbm [shape: f32[1,1,32], index: 9, kind: output, shape index: {5}]
  %10 = xla_tuple %s4, %s5, %s6, %s7, %s8, %s9
  %s11 = sld [smem:[#allocation0]]
  $region66: #{tpu_custom_call.1} parent=0
    _
  %s13 = ssub.s32 1, %s11
  %s14 = scalar_select 0, %s13, %s11
  $region1: #{tpu_custom_call.1} parent=0
    #allocation2 [shape = 'u8[65536]{0}', space=vmem, size = 0x10000, scoped, tag = 'output window, operand 1, single buffered']
    #allocation3 [shape = 's32[1]{0}', space=sflag, size = 0x4, scoped, tag = 'scoped memory for tpu_custom_call.1']
    #allocation4 [shape = 'u8[65536]{0}', space=vmem, size = 0x10000, scoped, tag = 'output window, operand 2, single buffered']
    #allocation5 [shape = 's32[1]{0}', space=sflag, size = 0x4, scoped, tag = 'scoped memory for tpu_custom_call.1']
    #allocation6 [shape = 'u8[512]{0}', space=vmem, size = 0x400, scoped, tag = 'output window, operand 4, single buffered']
    #allocation7 [shape = 'u8[512]{0}', space=vmem, size = 0x400, scoped, tag = 'output window, operand 5, single buffered']
    #allocation8 [shape = 's32[1]{0}', space=sflag, size = 0x4, scoped, tag = 'scoped memory for tpu_custom_call.1']
    %15 = vsyncpa [#allocation3], 0
    %16 = vsyncpa [#allocation5], 0
    %17 = vsyncpa [#allocation8], 0
    // Predicated region
    $region2: #{tpu_custom_call.1} parent=1 // pred_check
      _
    $region3: #{tpu_custom_call.1} parent=1 // pred_check_branch
      %19 = sbr.rel (0) target = $region5
    $region4: #{tpu_custom_call.1} parent=1 // pred_region
      _
    $region5: #{tpu_custom_call.1} parent=1 // pred_fallthru
      _
    // Predicated region
    $region6: #{tpu_custom_call.1} parent=1 // pred_check
      _
    $region7: #{tpu_custom_call.1} parent=1 // pred_check_branch
      %21 = sbr.rel (0) target = $region9
    $region8: #{tpu_custom_call.1} parent=1 // pred_region
      _
    $region9: #{tpu_custom_call.1} parent=1 // pred_fallthru
      _
    // Predicated region
    $region10: #{tpu_custom_call.1} parent=1 // pred_check
      _
    $region11: #{tpu_custom_call.1} parent=1 // pred_check_branch
      %23 = sbr.rel (0) target = $region13
    $region12: #{tpu_custom_call.1} parent=1 // pred_region
      _
    $region13: #{tpu_custom_call.1} parent=1 // pred_fallthru
      _
    // Predicated region
    $region14: #{tpu_custom_call.1} parent=1 // pred_check
      _
    $region15: #{tpu_custom_call.1} parent=1 // pred_check_branch
      %25 = sbr.rel (0) target = $region17
    $region16: #{tpu_custom_call.1} parent=1 // pred_region
      _
    $region17: #{tpu_custom_call.1} parent=1 // pred_fallthru
      _
    %v26 = vld [vmem:[%s0] sm:$0xff]
    %v27 = vld [vmem:[%s0 + $0x8] sm:$0xff]
    %v28 = vld [vmem:[%s0 + $0x10] sm:$0xff]
    %v29 = vld [vmem:[%s0 + $0x18] sm:$0xff]
    %v30 = vld [vmem:[%s0 + $0x20] sm:$0xff]
    %v31 = vld [vmem:[%s0 + $0x28] sm:$0xff]
    %v32 = vld [vmem:[%s0 + $0x30] sm:$0xff]
    %v33 = vld [vmem:[%s0 + $0x38] sm:$0xff]
    %v34 = vld [vmem:[%s0 + $0x40] sm:$0xff]
    %v35 = vld [vmem:[%s0 + $0x48] sm:$0xff]
    %v36 = vld [vmem:[%s0 + $0x50] sm:$0xff]
    %v37 = vld [vmem:[%s0 + $0x58] sm:$0xff]
    %v38 = vld [vmem:[%s0 + $0x60] sm:$0xff]
    %v39 = vld [vmem:[%s0 + $0x68] sm:$0xff]
    %v40 = vld [vmem:[%s0 + $0x70] sm:$0xff]
    %v41 = vld [vmem:[%s0 + $0x78] sm:$0xff]
    %v42 = vld [vmem:[%s1] sm:$0xff]
    %v43 = vld [vmem:[%s1 + $0x8] sm:$0xff]
    %v44 = vld [vmem:[%s1 + $0x10] sm:$0xff]
    %v45 = vld [vmem:[%s1 + $0x18] sm:$0xff]
    %v46 = vld [vmem:[%s1 + $0x20] sm:$0xff]
    %v47 = vld [vmem:[%s1 + $0x28] sm:$0xff]
    %v48 = vld [vmem:[%s1 + $0x30] sm:$0xff]
    %v49 = vld [vmem:[%s1 + $0x38] sm:$0xff]
    %v50 = vld [vmem:[%s1 + $0x40] sm:$0xff]
    %v51 = vld [vmem:[%s1 + $0x48] sm:$0xff]
    %v52 = vld [vmem:[%s1 + $0x50] sm:$0xff]
    %v53 = vld [vmem:[%s1 + $0x58] sm:$0xff]
    %v54 = vld [vmem:[%s1 + $0x60] sm:$0xff]
    %v55 = vld [vmem:[%s1 + $0x68] sm:$0xff]
    %v56 = vld [vmem:[%s1 + $0x70] sm:$0xff]
    %v57 = vld [vmem:[%s1 + $0x78] sm:$0xff]
    %v58 = vmul.f32 %v26, %v26
    %v59 = vmul.f32 %v27, %v27
    %v60 = vmul.f32 %v28, %v28
    %v61 = vmul.f32 %v29, %v29
    %v62 = vmul.f32 %v30, %v30
    %v63 = vmul.f32 %v31, %v31
    %v64 = vmul.f32 %v32, %v32
    %v65 = vmul.f32 %v33, %v33
    %v66 = vmul.f32 %v34, %v34
    %v67 = vmul.f32 %v35, %v35
    %v68 = vmul.f32 %v36, %v36
    %v69 = vmul.f32 %v37, %v37
    %v70 = vmul.f32 %v38, %v38
    %v71 = vmul.f32 %v39, %v39
    %v72 = vmul.f32 %v40, %v40
    %v73 = vmul.f32 %v41, %v41
    %vm74 = vcmask 261120
    %v75 = vsel %vm74, %v58, 0.0
    %76 = vadd.xlane.f32.xlu0 %v75
    %v77 = vpop.xlane.xlu0 %76
    %v78 = vsel %vm74, %v59, 0.0
    %79 = vadd.xlane.f32.xlu0 %v78
    %v80 = vpop.xlane.xlu0 %79
    %v81 = vsel %vm74, %v60, 0.0
    %82 = vadd.xlane.f32.xlu0 %v81
    %v83 = vpop.xlane.xlu0 %82
    %v84 = vsel %vm74, %v61, 0.0
    %85 = vadd.xlane.f32.xlu0 %v84
    %v86 = vpop.xlane.xlu0 %85
    %v87 = vsel %vm74, %v62, 0.0
    %88 = vadd.xlane.f32.xlu0 %v87
    %v89 = vpop.xlane.xlu0 %88
    %v90 = vsel %vm74, %v63, 0.0
    %91 = vadd.xlane.f32.xlu0 %v90
    %v92 = vpop.xlane.xlu0 %91
    %v93 = vsel %vm74, %v64, 0.0
    %94 = vadd.xlane.f32.xlu0 %v93
    %v95 = vpop.xlane.xlu0 %94
    %v96 = vsel %vm74, %v65, 0.0
    %97 = vadd.xlane.f32.xlu0 %v96
    %v98 = vpop.xlane.xlu0 %97
    %v99 = vsel %vm74, %v66, 0.0
    %100 = vadd.xlane.f32.xlu0 %v99
    %v101 = vpop.xlane.xlu0 %100
    %v102 = vsel %vm74, %v67, 0.0
    %103 = vadd.xlane.f32.xlu0 %v102
    %v104 = vpop.xlane.xlu0 %103
    %v105 = vsel %vm74, %v68, 0.0
    %106 = vadd.xlane.f32.xlu0 %v105
    %v107 = vpop.xlane.xlu0 %106
    %v108 = vsel %vm74, %v69, 0.0
    %109 = vadd.xlane.f32.xlu0 %v108
    %v110 = vpop.xlane.xlu0 %109
    %v111 = vsel %vm74, %v70, 0.0
    %112 = vadd.xlane.f32.xlu0 %v111
    %v113 = vpop.xlane.xlu0 %112
    %v114 = vsel %vm74, %v71, 0.0
    %115 = vadd.xlane.f32.xlu0 %v114
    %v116 = vpop.xlane.xlu0 %115
    %v117 = vsel %vm74, %v72, 0.0
    %118 = vadd.xlane.f32.xlu0 %v117
    %v119 = vpop.xlane.xlu0 %118
    %v120 = vsel %vm74, %v73, 0.0
    %121 = vadd.xlane.f32.xlu0 %v120
    %v122 = vpop.xlane.xlu0 %121
    %v124 = vsel %vm74, %v26, 0
    %v127 = vsel %vm74, %v27, 0
    %v130 = vsel %vm74, %v28, 0
    %v133 = vsel %vm74, %v29, 0
    %v136 = vsel %vm74, %v30, 0
    %v139 = vsel %vm74, %v31, 0
    %v142 = vsel %vm74, %v32, 0
    %v145 = vsel %vm74, %v33, 0
    %v148 = vsel %vm74, %v34, 0
    %v151 = vsel %vm74, %v35, 0
    %v154 = vsel %vm74, %v36, 0
    %v157 = vsel %vm74, %v37, 0
    %v160 = vsel %vm74, %v38, 0
    %v163 = vsel %vm74, %v39, 0
    %v166 = vsel %vm74, %v40, 0
    %v169 = vsel %vm74, %v41, 0
    %v172 = vsel %vm74, %v42, 0
    %v175 = vsel %vm74, %v43, 0
    %v178 = vsel %vm74, %v44, 0
    %v181 = vsel %vm74, %v45, 0
    %v184 = vsel %vm74, %v46, 0
    %v187 = vsel %vm74, %v47, 0
    %v190 = vsel %vm74, %v48, 0
    %v193 = vsel %vm74, %v49, 0
    %v196 = vsel %vm74, %v50, 0
    %v199 = vsel %vm74, %v51, 0
    %v202 = vsel %vm74, %v52, 0
    %v205 = vsel %vm74, %v53, 0
    %v208 = vsel %vm74, %v54, 0
    %v211 = vsel %vm74, %v55, 0
    %v214 = vsel %vm74, %v56, 0
    %v217 = vsel %vm74, %v57, 0
    %219 = vmatprep.subr.mxu0 0.0
    %220 = vmatpush1.xpose.msra.mxu0 %v172
    %221 = vmatprep.subr.mxu0 0.0
    %222 = vmatpush1.xpose.msra.mxu0 %v175
    %223 = vmatprep.subr.mxu0 0.0
    %224 = vmatpush1.xpose.msra.mxu0 %v178
    %225 = vmatprep.subr.mxu0 0.0
    %226 = vmatpush1.xpose.msra.mxu0 %v181
    %227 = vmatprep.subr.mxu0 0.0
    %228 = vmatpush1.xpose.msra.mxu0 %v184
    %229 = vmatprep.subr.mxu0 0.0
    %230 = vmatpush1.xpose.msra.mxu0 %v187
    %231 = vmatprep.subr.mxu0 0.0
    %232 = vmatpush1.xpose.msra.mxu0 %v190
    %233 = vmatprep.subr.mxu0 0.0
    %234 = vmatpush1.xpose.msra.mxu0 %v193
    %235 = vmatprep.subr.mxu0 0.0
    %236 = vmatpush1.xpose.msra.mxu0 %v196
    %237 = vmatprep.subr.mxu0 0.0
    %238 = vmatpush1.xpose.msra.mxu0 %v199
    %239 = vmatprep.subr.mxu0 0.0
    %240 = vmatpush1.xpose.msra.mxu0 %v202
    %241 = vmatprep.subr.mxu0 0.0
    %242 = vmatpush1.xpose.msra.mxu0 %v205
    %243 = vmatprep.subr.mxu0 0.0
    %244 = vmatpush1.xpose.msra.mxu0 %v208
    %245 = vmatprep.subr.mxu0 0.0
    %246 = vmatpush1.xpose.msra.mxu0 %v211
    %247 = vmatprep.subr.mxu0 0.0
    %248 = vmatpush1.xpose.msra.mxu0 %v214
    %249 = vmatprep.subr.mxu0 0.0
    %250 = vmatpush1.xpose.msra.mxu0 %v217
    %251 = vmatprep.subr.mxu0 0.0
    %252 = vmatpush1.xpose.msra.mxu0 0.0
    %253 = vmatprep.subr.mxu0 0.0
    %254 = vmatpush1.xpose.msra.mxu0 0.0
    %255 = vmatprep.subr.mxu0 0.0
    %256 = vmatpush1.xpose.msra.mxu0 0.0
    %257 = vmatprep.subr.mxu0 0.0
    %258 = vmatpush1.xpose.msra.mxu0 0.0
    %259 = vmatprep.subr.mxu0 0.0
    %260 = vmatpush1.xpose.msra.mxu0 0.0
    %261 = vmatprep.subr.mxu0 0.0
    %262 = vmatpush1.xpose.msra.mxu0 0.0
    %263 = vmatprep.subr.mxu0 0.0
    %264 = vmatpush1.xpose.msra.mxu0 0.0
    %265 = vmatprep.subr.mxu0 0.0
    %266 = vmatpush1.xpose.msra.mxu0 0.0
    %267 = vmatprep.subr.mxu0 0.0
    %268 = vmatpush1.xpose.msra.mxu0 0.0
    %269 = vmatprep.subr.mxu0 0.0
    %270 = vmatpush1.xpose.msra.mxu0 0.0
    %271 = vmatprep.subr.mxu0 0.0
    %272 = vmatpush1.xpose.msra.mxu0 0.0
    %273 = vmatprep.subr.mxu0 0.0
    %274 = vmatpush1.xpose.msra.mxu0 0.0
    %275 = vmatprep.subr.mxu0 0.0
    %276 = vmatpush1.xpose.msra.mxu0 0.0
    %277 = vmatprep.subr.mxu0 0.0
    %278 = vmatpush1.xpose.msra.mxu0 0.0
    %279 = vmatprep.subr.mxu0 0.0
    %280 = vmatpush1.xpose.msra.mxu0 0.0
    %281 = vmatprep.subr.mxu0 0.0
    %282 = vmatpush1.xpose.msra.mxu0 0.0
    %283 = vmatprep.mubr.f32.mxu0 0.0
    %284 = vmatmul.mubr.f32.gmra.mrb[0].mxu0 %v124
    %v285 = vpop.f32.mrb[0].mxu0
    %v286 = vadd.f32 0.0, %v285
    %v287 = vpop.f32.mrb[0].mxu0
    %288 = vmatprep.mubr.f32.mxu0 0.0
    %289 = vmatmul.mubr.f32.gmra.mrb[0].mxu0 %v127
    %v290 = vpop.f32.mrb[0].mxu0
    %v291 = vadd.f32 0.0, %v290
    %v292 = vpop.f32.mrb[0].mxu0
    %293 = vmatprep.mubr.f32.mxu0 0.0
    %294 = vmatmul.mubr.f32.gmra.mrb[0].mxu0 %v130
    %v295 = vpop.f32.mrb[0].mxu0
    %v296 = vadd.f32 0.0, %v295
    %v297 = vpop.f32.mrb[0].mxu0
    %298 = vmatprep.mubr.f32.mxu0 0.0
    %299 = vmatmul.mubr.f32.gmra.mrb[0].mxu0 %v133
    %v300 = vpop.f32.mrb[0].mxu0
    %v301 = vadd.f32 0.0, %v300
    %v302 = vpop.f32.mrb[0].mxu0
    %303 = vmatprep.mubr.f32.mxu0 0.0
    %304 = vmatmul.mubr.f32.gmra.mrb[0].mxu0 %v136
    %v305 = vpop.f32.mrb[0].mxu0
    %v306 = vadd.f32 0.0, %v305
    %v307 = vpop.f32.mrb[0].mxu0
    %308 = vmatprep.mubr.f32.mxu0 0.0
    %309 = vmatmul.mubr.f32.gmra.mrb[0].mxu0 %v139
    %v310 = vpop.f32.mrb[0].mxu0
    %v311 = vadd.f32 0.0, %v310
    %v312 = vpop.f32.mrb[0].mxu0
    %313 = vmatprep.mubr.f32.mxu0 0.0
    %314 = vmatmul.mubr.f32.gmra.mrb[0].mxu0 %v142
    %v315 = vpop.f32.mrb[0].mxu0
    %v316 = vadd.f32 0.0, %v315
    %v317 = vpop.f32.mrb[0].mxu0
    %318 = vmatprep.mubr.f32.mxu0 0.0
    %319 = vmatmul.mubr.f32.gmra.mrb[0].mxu0 %v145
    %v320 = vpop.f32.mrb[0].mxu0
    %v321 = vadd.f32 0.0, %v320
    %v322 = vpop.f32.mrb[0].mxu0
    %323 = vmatprep.mubr.f32.mxu0 0.0
    %324 = vmatmul.mubr.f32.gmra.mrb[0].mxu0 %v148
    %v325 = vpop.f32.mrb[0].mxu0
    %v326 = vadd.f32 0.0, %v325
    %v327 = vpop.f32.mrb[0].mxu0
    %328 = vmatprep.mubr.f32.mxu0 0.0
    %329 = vmatmul.mubr.f32.gmra.mrb[0].mxu0 %v151
    %v330 = vpop.f32.mrb[0].mxu0
    %v331 = vadd.f32 0.0, %v330
    %v332 = vpop.f32.mrb[0].mxu0
    %333 = vmatprep.mubr.f32.mxu0 0.0
    %334 = vmatmul.mubr.f32.gmra.mrb[0].mxu0 %v154
    %v335 = vpop.f32.mrb[0].mxu0
    %v336 = vadd.f32 0.0, %v335
    %v337 = vpop.f32.mrb[0].mxu0
    %338 = vmatprep.mubr.f32.mxu0 0.0
    %339 = vmatmul.mubr.f32.gmra.mrb[0].mxu0 %v157
    %v340 = vpop.f32.mrb[0].mxu0
    %v341 = vadd.f32 0.0, %v340
    %v342 = vpop.f32.mrb[0].mxu0
    %343 = vmatprep.mubr.f32.mxu0 0.0
    %344 = vmatmul.mubr.f32.gmra.mrb[0].mxu0 %v160
    %v345 = vpop.f32.mrb[0].mxu0
    %v346 = vadd.f32 0.0, %v345
    %v347 = vpop.f32.mrb[0].mxu0
    %348 = vmatprep.mubr.f32.mxu0 0.0
    %349 = vmatmul.mubr.f32.gmra.mrb[0].mxu0 %v163
    %v350 = vpop.f32.mrb[0].mxu0
    %v351 = vadd.f32 0.0, %v350
    %v352 = vpop.f32.mrb[0].mxu0
    %353 = vmatprep.mubr.f32.mxu0 0.0
    %354 = vmatmul.mubr.f32.gmra.mrb[0].mxu0 %v166
    %v355 = vpop.f32.mrb[0].mxu0
    %v356 = vadd.f32 0.0, %v355
    %v357 = vpop.f32.mrb[0].mxu0
    %358 = vmatprep.mubr.f32.mxu0 0.0
    %359 = vmatmul.mubr.f32.gmra.mrb[0].mxu0 %v169
    %v360 = vpop.f32.mrb[0].mxu0
    %v361 = vadd.f32 0.0, %v360
    %v362 = vpop.f32.mrb[0].mxu0
    %363 = vdwg.mxu0
    %v364 = vld [vmem:[%s2] sm:$0x1]
    %v366 = vlaneseq
    %v367 = vshrl.u32 %v366, 7
    %v368 = vsub.s32 0, %v367
    %v369 = vrot.slane %v364, %v368
    %v371 = vadd.f32 %v77, %v369
    %v372 = vadd.f32 %v80, %v369
    %v373 = vadd.f32 %v83, %v369
    %v374 = vadd.f32 %v86, %v369
    %v375 = vadd.f32 %v89, %v369
    %v376 = vadd.f32 %v92, %v369
    %v377 = vadd.f32 %v95, %v369
    %v378 = vadd.f32 %v98, %v369
    %v379 = vadd.f32 %v101, %v369
    %v380 = vadd.f32 %v104, %v369
    %v381 = vadd.f32 %v107, %v369
    %v382 = vadd.f32 %v110, %v369
    %v383 = vadd.f32 %v113, %v369
    %v384 = vadd.f32 %v116, %v369
    %v385 = vadd.f32 %v119, %v369
    %v386 = vadd.f32 %v122, %v369
    %v387 = vmul.f32 %v286, 2.0
    %v388 = vmul.f32 %v291, 2.0
    %v389 = vmul.f32 %v296, 2.0
    %v390 = vmul.f32 %v301, 2.0
    %v391 = vmul.f32 %v306, 2.0
    %v392 = vmul.f32 %v311, 2.0
    %v393 = vmul.f32 %v316, 2.0
    %v394 = vmul.f32 %v321, 2.0
    %v395 = vmul.f32 %v326, 2.0
    %v396 = vmul.f32 %v331, 2.0
    %v397 = vmul.f32 %v336, 2.0
    %v398 = vmul.f32 %v341, 2.0
    %v399 = vmul.f32 %v346, 2.0
    %v400 = vmul.f32 %v351, 2.0
    %v401 = vmul.f32 %v356, 2.0
    %v402 = vmul.f32 %v361, 2.0
    %v403 = vsub.f32 %v371, %v387
    %v404 = vsub.f32 %v372, %v388
    %v405 = vsub.f32 %v373, %v389
    %v406 = vsub.f32 %v374, %v390
    %v407 = vsub.f32 %v375, %v391
    %v408 = vsub.f32 %v376, %v392
    %v409 = vsub.f32 %v377, %v393
    %v410 = vsub.f32 %v378, %v394
    %v411 = vsub.f32 %v379, %v395
    %v412 = vsub.f32 %v380, %v396
    %v413 = vsub.f32 %v381, %v397
    %v414 = vsub.f32 %v382, %v398
    %v415 = vsub.f32 %v383, %v399
    %v416 = vsub.f32 %v384, %v400
    %v417 = vsub.f32 %v385, %v401
    %v418 = vsub.f32 %v386, %v402
    %419 = vst [vmem:[#allocation2] sm:$0xff] %v403
    %420 = vst [vmem:[#allocation2 + $0x8] sm:$0xff] %v404
    %421 = vst [vmem:[#allocation2 + $0x10] sm:$0xff] %v405
    %422 = vst [vmem:[#allocation2 + $0x18] sm:$0xff] %v406
    %423 = vst [vmem:[#allocation2 + $0x20] sm:$0xff] %v407
    %424 = vst [vmem:[#allocation2 + $0x28] sm:$0xff] %v408
    %425 = vst [vmem:[#allocation2 + $0x30] sm:$0xff] %v409
    %426 = vst [vmem:[#allocation2 + $0x38] sm:$0xff] %v410
    %427 = vst [vmem:[#allocation2 + $0x40] sm:$0xff] %v411
    %428 = vst [vmem:[#allocation2 + $0x48] sm:$0xff] %v412
    %429 = vst [vmem:[#allocation2 + $0x50] sm:$0xff] %v413
    %430 = vst [vmem:[#allocation2 + $0x58] sm:$0xff] %v414
    %431 = vst [vmem:[#allocation2 + $0x60] sm:$0xff] %v415
    %432 = vst [vmem:[#allocation2 + $0x68] sm:$0xff] %v416
    %433 = vst [vmem:[#allocation2 + $0x70] sm:$0xff] %v417
    %434 = vst [vmem:[#allocation2 + $0x78] sm:$0xff] %v418
    %v435 = vld [vmem:[%s3] sm:$0x1]
    %v437 = vlaneseq
    %v438 = vshrl.u32 %v437, 7
    %v439 = vsub.s32 0, %v438
    %v440 = vrot.slane %v435, %v439
    %442 = vmin.xlane.f32.xlu0 %v403
    %v443 = vpop.xlane.xlu0 %442
    %444 = vmin.xlane.f32.xlu0 %v404
    %v445 = vpop.xlane.xlu0 %444
    %446 = vmin.xlane.f32.xlu0 %v405
    %v447 = vpop.xlane.xlu0 %446
    %448 = vmin.xlane.f32.xlu0 %v406
    %v449 = vpop.xlane.xlu0 %448
    %450 = vmin.xlane.f32.xlu0 %v407
    %v451 = vpop.xlane.xlu0 %450
    %452 = vmin.xlane.f32.xlu0 %v408
    %v453 = vpop.xlane.xlu0 %452
    %454 = vmin.xlane.f32.xlu0 %v409
    %v455 = vpop.xlane.xlu0 %454
    %456 = vmin.xlane.f32.xlu0 %v410
    %v457 = vpop.xlane.xlu0 %456
    %458 = vmin.xlane.f32.xlu0 %v411
    %v459 = vpop.xlane.xlu0 %458
    %460 = vmin.xlane.f32.xlu0 %v412
    %v461 = vpop.xlane.xlu0 %460
    %462 = vmin.xlane.f32.xlu0 %v413
    %v463 = vpop.xlane.xlu0 %462
    %464 = vmin.xlane.f32.xlu0 %v414
    %v465 = vpop.xlane.xlu0 %464
    %466 = vmin.xlane.f32.xlu0 %v415
    %v467 = vpop.xlane.xlu0 %466
    %468 = vmin.xlane.f32.xlu0 %v416
    %v469 = vpop.xlane.xlu0 %468
    %470 = vmin.xlane.f32.xlu0 %v417
    %v471 = vpop.xlane.xlu0 %470
    %472 = vmin.xlane.f32.xlu0 %v418
    %v473 = vpop.xlane.xlu0 %472
    %vm474 = vcmp.eq.f32.partialorder %v403, %v443
    %vm475 = vcmp.eq.f32.partialorder %v404, %v445
    %vm476 = vcmp.eq.f32.partialorder %v405, %v447
    %vm477 = vcmp.eq.f32.partialorder %v406, %v449
    %vm478 = vcmp.eq.f32.partialorder %v407, %v451
    %vm479 = vcmp.eq.f32.partialorder %v408, %v453
    %vm480 = vcmp.eq.f32.partialorder %v409, %v455
    %vm481 = vcmp.eq.f32.partialorder %v410, %v457
    %vm482 = vcmp.eq.f32.partialorder %v411, %v459
    %vm483 = vcmp.eq.f32.partialorder %v412, %v461
    %vm484 = vcmp.eq.f32.partialorder %v413, %v463
    %vm485 = vcmp.eq.f32.partialorder %v414, %v465
    %vm486 = vcmp.eq.f32.partialorder %v415, %v467
    %vm487 = vcmp.eq.f32.partialorder %v416, %v469
    %vm488 = vcmp.eq.f32.partialorder %v417, %v471
    %vm489 = vcmp.eq.f32.partialorder %v418, %v473
    %v490 = vsel %vm474, %v440, 128.0
    %v491 = vsel %vm475, %v440, 128.0
    %v492 = vsel %vm476, %v440, 128.0
    %v493 = vsel %vm477, %v440, 128.0
    %v494 = vsel %vm478, %v440, 128.0
    %v495 = vsel %vm479, %v440, 128.0
    %v496 = vsel %vm480, %v440, 128.0
    %v497 = vsel %vm481, %v440, 128.0
    %v498 = vsel %vm482, %v440, 128.0
    %v499 = vsel %vm483, %v440, 128.0
    %v500 = vsel %vm484, %v440, 128.0
    %v501 = vsel %vm485, %v440, 128.0
    %v502 = vsel %vm486, %v440, 128.0
    %v503 = vsel %vm487, %v440, 128.0
    %v504 = vsel %vm488, %v440, 128.0
    %v505 = vsel %vm489, %v440, 128.0
    %506 = vmin.xlane.f32.xlu0 %v490
    %v507 = vpop.xlane.xlu0 %506
    %508 = vmin.xlane.f32.xlu0 %v491
    %v509 = vpop.xlane.xlu0 %508
    %510 = vmin.xlane.f32.xlu0 %v492
    %v511 = vpop.xlane.xlu0 %510
    %512 = vmin.xlane.f32.xlu0 %v493
    %v513 = vpop.xlane.xlu0 %512
    %514 = vmin.xlane.f32.xlu0 %v494
    %v515 = vpop.xlane.xlu0 %514
    %516 = vmin.xlane.f32.xlu0 %v495
    %v517 = vpop.xlane.xlu0 %516
    %518 = vmin.xlane.f32.xlu0 %v496
    %v519 = vpop.xlane.xlu0 %518
    %520 = vmin.xlane.f32.xlu0 %v497
    %v521 = vpop.xlane.xlu0 %520
    %522 = vmin.xlane.f32.xlu0 %v498
    %v523 = vpop.xlane.xlu0 %522
    %524 = vmin.xlane.f32.xlu0 %v499
    %v525 = vpop.xlane.xlu0 %524
    %526 = vmin.xlane.f32.xlu0 %v500
    %v527 = vpop.xlane.xlu0 %526
    %528 = vmin.xlane.f32.xlu0 %v501
    %v529 = vpop.xlane.xlu0 %528
    %530 = vmin.xlane.f32.xlu0 %v502
    %v531 = vpop.xlane.xlu0 %530
    %532 = vmin.xlane.f32.xlu0 %v503
    %v533 = vpop.xlane.xlu0 %532
    %534 = vmin.xlane.f32.xlu0 %v504
    %v535 = vpop.xlane.xlu0 %534
    %536 = vmin.xlane.f32.xlu0 %v505
    %v537 = vpop.xlane.xlu0 %536
    %v538 = vcvt.f32.s32.to.zero.pseudo %v507
    %v539 = vcvt.f32.s32.to.zero.pseudo %v509
    %v540 = vcvt.f32.s32.to.zero.pseudo %v511
    %v541 = vcvt.f32.s32.to.zero.pseudo %v513
    %v542 = vcvt.f32.s32.to.zero.pseudo %v515
    %v543 = vcvt.f32.s32.to.zero.pseudo %v517
    %v544 = vcvt.f32.s32.to.zero.pseudo %v519
    %v545 = vcvt.f32.s32.to.zero.pseudo %v521
    %v546 = vcvt.f32.s32.to.zero.pseudo %v523
    %v547 = vcvt.f32.s32.to.zero.pseudo %v525
    %v548 = vcvt.f32.s32.to.zero.pseudo %v527
    %v549 = vcvt.f32.s32.to.zero.pseudo %v529
    %v550 = vcvt.f32.s32.to.zero.pseudo %v531
    %v551 = vcvt.f32.s32.to.zero.pseudo %v533
    %v552 = vcvt.f32.s32.to.zero.pseudo %v535
    %v553 = vcvt.f32.s32.to.zero.pseudo %v537
    %vm554 = vcmask 7168
    %555 = vst.msk [vmem:[%s7] sm:$0xff] %vm554, %v538
    %556 = vst.msk [vmem:[%s7 + $0x8] sm:$0xff] %vm554, %v539
    %557 = vst.msk [vmem:[%s7 + $0x10] sm:$0xff] %vm554, %v540
    %558 = vst.msk [vmem:[%s7 + $0x18] sm:$0xff] %vm554, %v541
    %559 = vst.msk [vmem:[%s7 + $0x20] sm:$0xff] %vm554, %v542
    %560 = vst.msk [vmem:[%s7 + $0x28] sm:$0xff] %vm554, %v543
    %561 = vst.msk [vmem:[%s7 + $0x30] sm:$0xff] %vm554, %v544
    %562 = vst.msk [vmem:[%s7 + $0x38] sm:$0xff] %vm554, %v545
    %563 = vst.msk [vmem:[%s7 + $0x40] sm:$0xff] %vm554, %v546
    %564 = vst.msk [vmem:[%s7 + $0x48] sm:$0xff] %vm554, %v547
    %565 = vst.msk [vmem:[%s7 + $0x50] sm:$0xff] %vm554, %v548
    %566 = vst.msk [vmem:[%s7 + $0x58] sm:$0xff] %vm554, %v549
    %567 = vst.msk [vmem:[%s7 + $0x60] sm:$0xff] %vm554, %v550
    %568 = vst.msk [vmem:[%s7 + $0x68] sm:$0xff] %vm554, %v551
    %569 = vst.msk [vmem:[%s7 + $0x70] sm:$0xff] %vm554, %v552
    %570 = vst.msk [vmem:[%s7 + $0x78] sm:$0xff] %vm554, %v553
    %vm571 = vcmp.eq.f32.partialorder %v440, %v507
    %vm572 = vcmp.eq.f32.partialorder %v440, %v509
    %vm573 = vcmp.eq.f32.partialorder %v440, %v511
    %vm574 = vcmp.eq.f32.partialorder %v440, %v513
    %vm575 = vcmp.eq.f32.partialorder %v440, %v515
    %vm576 = vcmp.eq.f32.partialorder %v440, %v517
    %vm577 = vcmp.eq.f32.partialorder %v440, %v519
    %vm578 = vcmp.eq.f32.partialorder %v440, %v521
    %vm579 = vcmp.eq.f32.partialorder %v440, %v523
    %vm580 = vcmp.eq.f32.partialorder %v440, %v525
    %vm581 = vcmp.eq.f32.partialorder %v440, %v527
    %vm582 = vcmp.eq.f32.partialorder %v440, %v529
    %vm583 = vcmp.eq.f32.partialorder %v440, %v531
    %vm584 = vcmp.eq.f32.partialorder %v440, %v533
    %vm585 = vcmp.eq.f32.partialorder %v440, %v535
    %vm586 = vcmp.eq.f32.partialorder %v440, %v537
    %v587 = vsel %vm571, 1, 0
    %v588 = vsel %vm572, 1, 0
    %v589 = vsel %vm573, 1, 0
    %v590 = vsel %vm574, 1, 0
    %v591 = vsel %vm575, 1, 0
    %v592 = vsel %vm576, 1, 0
    %v593 = vsel %vm577, 1, 0
    %v594 = vsel %vm578, 1, 0
    %v595 = vsel %vm579, 1, 0
    %v596 = vsel %vm580, 1, 0
    %v597 = vsel %vm581, 1, 0
    %v598 = vsel %vm582, 1, 0
    %v599 = vsel %vm583, 1, 0
    %v600 = vsel %vm584, 1, 0
    %v601 = vsel %vm585, 1, 0
    %v602 = vsel %vm586, 1, 0
    %v603 = vcvt.s32.f32 %v587
    %v604 = vcvt.s32.f32 %v588
    %v605 = vcvt.s32.f32 %v589
    %v606 = vcvt.s32.f32 %v590
    %v607 = vcvt.s32.f32 %v591
    %v608 = vcvt.s32.f32 %v592
    %v609 = vcvt.s32.f32 %v593
    %v610 = vcvt.s32.f32 %v594
    %v611 = vcvt.s32.f32 %v595
    %v612 = vcvt.s32.f32 %v596
    %v613 = vcvt.s32.f32 %v597
    %v614 = vcvt.s32.f32 %v598
    %v615 = vcvt.s32.f32 %v599
    %v616 = vcvt.s32.f32 %v600
    %v617 = vcvt.s32.f32 %v601
    %v618 = vcvt.s32.f32 %v602
    %619 = vst [vmem:[#allocation4] sm:$0xff] %v603
    %620 = vst [vmem:[#allocation4 + $0x8] sm:$0xff] %v604
    %621 = vst [vmem:[#allocation4 + $0x10] sm:$0xff] %v605
    %622 = vst [vmem:[#allocation4 + $0x18] sm:$0xff] %v606
    %623 = vst [vmem:[#allocation4 + $0x20] sm:$0xff] %v607
    %624 = vst [vmem:[#allocation4 + $0x28] sm:$0xff] %v608
    %625 = vst [vmem:[#allocation4 + $0x30] sm:$0xff] %v609
    %626 = vst [vmem:[#allocation4 + $0x38] sm:$0xff] %v610
    %627 = vst [vmem:[#allocation4 + $0x40] sm:$0xff] %v611
    %628 = vst [vmem:[#allocation4 + $0x48] sm:$0xff] %v612
    %629 = vst [vmem:[#allocation4 + $0x50] sm:$0xff] %v613
    %630 = vst [vmem:[#allocation4 + $0x58] sm:$0xff] %v614
    %631 = vst [vmem:[#allocation4 + $0x60] sm:$0xff] %v615
    %632 = vst [vmem:[#allocation4 + $0x68] sm:$0xff] %v616
    %633 = vst [vmem:[#allocation4 + $0x70] sm:$0xff] %v617
    %634 = vst [vmem:[#allocation4 + $0x78] sm:$0xff] %v618
    %635 = vmatprep.subr.mxu0 0.0
    %636 = vmatpush1.msra.mxu0 %v42
    %637 = vmatprep.subr.mxu0 0.0
    %638 = vmatpush1.msra.mxu0 %v43
    %639 = vmatprep.subr.mxu0 0.0
    %640 = vmatpush1.msra.mxu0 %v44
    %641 = vmatprep.subr.mxu0 0.0
    %642 = vmatpush1.msra.mxu0 %v45
    %643 = vmatprep.subr.mxu0 0.0
    %644 = vmatpush1.msra.mxu0 %v46
    %645 = vmatprep.subr.mxu0 0.0
    %646 = vmatpush1.msra.mxu0 %v47
    %647 = vmatprep.subr.mxu0 0.0
    %648 = vmatpush1.msra.mxu0 %v48
    %649 = vmatprep.subr.mxu0 0.0
    %650 = vmatpush1.msra.mxu0 %v49
    %651 = vmatprep.subr.mxu0 0.0
    %652 = vmatpush1.msra.mxu0 %v50
    %653 = vmatprep.subr.mxu0 0.0
    %654 = vmatpush1.msra.mxu0 %v51
    %655 = vmatprep.subr.mxu0 0.0
    %656 = vmatpush1.msra.mxu0 %v52
    %657 = vmatprep.subr.mxu0 0.0
    %658 = vmatpush1.msra.mxu0 %v53
    %659 = vmatprep.subr.mxu0 0.0
    %660 = vmatpush1.msra.mxu0 %v54
    %661 = vmatprep.subr.mxu0 0.0
    %662 = vmatpush1.msra.mxu0 %v55
    %663 = vmatprep.subr.mxu0 0.0
    %664 = vmatpush1.msra.mxu0 %v56
    %665 = vmatprep.subr.mxu0 0.0
    %666 = vmatpush1.msra.mxu0 %v57
    %667 = vmatprep.subr.mxu0 0.0
    %668 = vmatpush1.msra.mxu0 0.0
    %669 = vmatprep.subr.mxu0 0.0
    %670 = vmatpush1.msra.mxu0 0.0
    %671 = vmatprep.subr.mxu0 0.0
    %672 = vmatpush1.msra.mxu0 0.0
    %673 = vmatprep.subr.mxu0 0.0
    %674 = vmatpush1.msra.mxu0 0.0
    %675 = vmatprep.subr.mxu0 0.0
    %676 = vmatpush1.msra.mxu0 0.0
    %677 = vmatprep.subr.mxu0 0.0
    %678 = vmatpush1.msra.mxu0 0.0
    %679 = vmatprep.subr.mxu0 0.0
    %680 = vmatpush1.msra.mxu0 0.0
    %681 = vmatprep.subr.mxu0 0.0
    %682 = vmatpush1.msra.mxu0 0.0
    %683 = vmatprep.subr.mxu0 0.0
    %684 = vmatpush1.msra.mxu0 0.0
    %685 = vmatprep.subr.mxu0 0.0
    %686 = vmatpush1.msra.mxu0 0.0
    %687 = vmatprep.subr.mxu0 0.0
    %688 = vmatpush1.msra.mxu0 0.0
    %689 = vmatprep.subr.mxu0 0.0
    %690 = vmatpush1.msra.mxu0 0.0
    %691 = vmatprep.subr.mxu0 0.0
    %692 = vmatpush1.msra.mxu0 0.0
    %693 = vmatprep.subr.mxu0 0.0
    %694 = vmatpush1.msra.mxu0 0.0
    %695 = vmatprep.subr.mxu0 0.0
    %696 = vmatpush1.msra.mxu0 0.0
    %697 = vmatprep.subr.mxu0 0.0
    %698 = vmatpush1.msra.mxu0 0.0
    %699 = vmatprep.mubr.f32.mxu0 0.0
    %700 = vmatmul.mubr.f32.gmra.mrb[0].mxu0 %v603
    %v701 = vpop.f32.mrb[0].mxu0
    %v702 = vadd.f32 0.0, %v701
    %v703 = vpop.f32.mrb[0].mxu0
    %704 = vmatprep.mubr.f32.mxu0 0.0
    %705 = vmatmul.mubr.f32.gmra.mrb[0].mxu0 %v604
    %v706 = vpop.f32.mrb[0].mxu0
    %v707 = vadd.f32 0.0, %v706
    %v708 = vpop.f32.mrb[0].mxu0
    %709 = vmatprep.mubr.f32.mxu0 0.0
    %710 = vmatmul.mubr.f32.gmra.mrb[0].mxu0 %v605
    %v711 = vpop.f32.mrb[0].mxu0
    %v712 = vadd.f32 0.0, %v711
    %v713 = vpop.f32.mrb[0].mxu0
    %714 = vmatprep.mubr.f32.mxu0 0.0
    %715 = vmatmul.mubr.f32.gmra.mrb[0].mxu0 %v606
    %v716 = vpop.f32.mrb[0].mxu0
    %v717 = vadd.f32 0.0, %v716
    %v718 = vpop.f32.mrb[0].mxu0
    %719 = vmatprep.mubr.f32.mxu0 0.0
    %720 = vmatmul.mubr.f32.gmra.mrb[0].mxu0 %v607
    %v721 = vpop.f32.mrb[0].mxu0
    %v722 = vadd.f32 0.0, %v721
    %v723 = vpop.f32.mrb[0].mxu0
    %724 = vmatprep.mubr.f32.mxu0 0.0
    %725 = vmatmul.mubr.f32.gmra.mrb[0].mxu0 %v608
    %v726 = vpop.f32.mrb[0].mxu0
    %v727 = vadd.f32 0.0, %v726
    %v728 = vpop.f32.mrb[0].mxu0
    %729 = vmatprep.mubr.f32.mxu0 0.0
    %730 = vmatmul.mubr.f32.gmra.mrb[0].mxu0 %v609
    %v731 = vpop.f32.mrb[0].mxu0
    %v732 = vadd.f32 0.0, %v731
    %v733 = vpop.f32.mrb[0].mxu0
    %734 = vmatprep.mubr.f32.mxu0 0.0
    %735 = vmatmul.mubr.f32.gmra.mrb[0].mxu0 %v610
    %v736 = vpop.f32.mrb[0].mxu0
    %v737 = vadd.f32 0.0, %v736
    %v738 = vpop.f32.mrb[0].mxu0
    %739 = vmatprep.mubr.f32.mxu0 0.0
    %740 = vmatmul.mubr.f32.gmra.mrb[0].mxu0 %v611
    %v741 = vpop.f32.mrb[0].mxu0
    %v742 = vadd.f32 0.0, %v741
    %v743 = vpop.f32.mrb[0].mxu0
    %744 = vmatprep.mubr.f32.mxu0 0.0
    %745 = vmatmul.mubr.f32.gmra.mrb[0].mxu0 %v612
    %v746 = vpop.f32.mrb[0].mxu0
    %v747 = vadd.f32 0.0, %v746
    %v748 = vpop.f32.mrb[0].mxu0
    %749 = vmatprep.mubr.f32.mxu0 0.0
    %750 = vmatmul.mubr.f32.gmra.mrb[0].mxu0 %v613
    %v751 = vpop.f32.mrb[0].mxu0
    %v752 = vadd.f32 0.0, %v751
    %v753 = vpop.f32.mrb[0].mxu0
    %754 = vmatprep.mubr.f32.mxu0 0.0
    %755 = vmatmul.mubr.f32.gmra.mrb[0].mxu0 %v614
    %v756 = vpop.f32.mrb[0].mxu0
    %v757 = vadd.f32 0.0, %v756
    %v758 = vpop.f32.mrb[0].mxu0
    %759 = vmatprep.mubr.f32.mxu0 0.0
    %760 = vmatmul.mubr.f32.gmra.mrb[0].mxu0 %v615
    %v761 = vpop.f32.mrb[0].mxu0
    %v762 = vadd.f32 0.0, %v761
    %v763 = vpop.f32.mrb[0].mxu0
    %764 = vmatprep.mubr.f32.mxu0 0.0
    %765 = vmatmul.mubr.f32.gmra.mrb[0].mxu0 %v616
    %v766 = vpop.f32.mrb[0].mxu0
    %v767 = vadd.f32 0.0, %v766
    %v768 = vpop.f32.mrb[0].mxu0
    %769 = vmatprep.mubr.f32.mxu0 0.0
    %770 = vmatmul.mubr.f32.gmra.mrb[0].mxu0 %v617
    %v771 = vpop.f32.mrb[0].mxu0
    %v772 = vadd.f32 0.0, %v771
    %v773 = vpop.f32.mrb[0].mxu0
    %774 = vmatprep.mubr.f32.mxu0 0.0
    %775 = vmatmul.mubr.f32.gmra.mrb[0].mxu0 %v618
    %v776 = vpop.f32.mrb[0].mxu0
    %v777 = vadd.f32 0.0, %v776
    %v778 = vpop.f32.mrb[0].mxu0
    %779 = vdwg.mxu0
    %780 = vst.msk [vmem:[%s4] sm:$0xff] %vm74, %v702
    %781 = vst.msk [vmem:[%s4 + $0x8] sm:$0xff] %vm74, %v707
    %782 = vst.msk [vmem:[%s4 + $0x10] sm:$0xff] %vm74, %v712
    %783 = vst.msk [vmem:[%s4 + $0x18] sm:$0xff] %vm74, %v717
    %784 = vst.msk [vmem:[%s4 + $0x20] sm:$0xff] %vm74, %v722
    %785 = vst.msk [vmem:[%s4 + $0x28] sm:$0xff] %vm74, %v727
    %786 = vst.msk [vmem:[%s4 + $0x30] sm:$0xff] %vm74, %v732
    %787 = vst.msk [vmem:[%s4 + $0x38] sm:$0xff] %vm74, %v737
    %788 = vst.msk [vmem:[%s4 + $0x40] sm:$0xff] %vm74, %v742
    %789 = vst.msk [vmem:[%s4 + $0x48] sm:$0xff] %vm74, %v747
    %790 = vst.msk [vmem:[%s4 + $0x50] sm:$0xff] %vm74, %v752
    %791 = vst.msk [vmem:[%s4 + $0x58] sm:$0xff] %vm74, %v757
    %792 = vst.msk [vmem:[%s4 + $0x60] sm:$0xff] %vm74, %v762
    %793 = vst.msk [vmem:[%s4 + $0x68] sm:$0xff] %vm74, %v767
    %794 = vst.msk [vmem:[%s4 + $0x70] sm:$0xff] %vm74, %v772
    %795 = vst.msk [vmem:[%s4 + $0x78] sm:$0xff] %vm74, %v777
    %v796 = vsub.f32 %v702, %v26
    %v797 = vsub.f32 %v707, %v27
    %v798 = vsub.f32 %v712, %v28
    %v799 = vsub.f32 %v717, %v29
    %v800 = vsub.f32 %v722, %v30
    %v801 = vsub.f32 %v727, %v31
    %v802 = vsub.f32 %v732, %v32
    %v803 = vsub.f32 %v737, %v33
    %v804 = vsub.f32 %v742, %v34
    %v805 = vsub.f32 %v747, %v35
    %v806 = vsub.f32 %v752, %v36
    %v807 = vsub.f32 %v757, %v37
    %v808 = vsub.f32 %v762, %v38
    %v809 = vsub.f32 %v767, %v39
    %v810 = vsub.f32 %v772, %v40
    %v811 = vsub.f32 %v777, %v41
    %v812 = vadd.f32 %v603, %v604
    %v813 = vadd.f32 %v812, %v605
    %v814 = vadd.f32 %v813, %v606
    %v815 = vadd.f32 %v814, %v607
    %v816 = vadd.f32 %v815, %v608
    %v817 = vadd.f32 %v816, %v609
    %v818 = vadd.f32 %v817, %v610
    %v819 = vadd.f32 %v818, %v611
    %v820 = vadd.f32 %v819, %v612
    %v821 = vadd.f32 %v820, %v613
    %v822 = vadd.f32 %v821, %v614
    %v823 = vadd.f32 %v822, %v615
    %v824 = vadd.f32 %v823, %v616
    %v825 = vadd.f32 %v824, %v617
    %v826 = vadd.f32 %v825, %v618
    %v827 = vrot.slane %v826, 4
    %v828 = vadd.f32 %v826, %v827
    %v829 = vrot.slane %v828, 2
    %v830 = vadd.f32 %v828, %v829
    %v831 = vrot.slane %v830, 1
    %v832 = vadd.f32 %v830, %v831
    %833 = vst [vmem:[#allocation6] sm:$0x1] %v832
    %v834 = vmul.f32 %v796, %v796
    %v835 = vmul.f32 %v797, %v797
    %v836 = vmul.f32 %v798, %v798
    %v837 = vmul.f32 %v799, %v799
    %v838 = vmul.f32 %v800, %v800
    %v839 = vmul.f32 %v801, %v801
    %v840 = vmul.f32 %v802, %v802
    %v841 = vmul.f32 %v803, %v803
    %v842 = vmul.f32 %v804, %v804
    %v843 = vmul.f32 %v805, %v805
    %v844 = vmul.f32 %v806, %v806
    %v845 = vmul.f32 %v807, %v807
    %v846 = vmul.f32 %v808, %v808
    %v847 = vmul.f32 %v809, %v809
    %v848 = vmul.f32 %v810, %v810
    %v849 = vmul.f32 %v811, %v811
    %v850 = vsel %vm74, %v834, 0.0
    %v851 = vsel %vm74, %v835, 0.0
    %v852 = vadd.f32 %v850, %v851
    %v853 = vsel %vm74, %v836, 0.0
    %v854 = vadd.f32 %v852, %v853
    %v855 = vsel %vm74, %v837, 0.0
    %v856 = vadd.f32 %v854, %v855
    %v857 = vsel %vm74, %v838, 0.0
    %v858 = vadd.f32 %v856, %v857
    %v859 = vsel %vm74, %v839, 0.0
    %v860 = vadd.f32 %v858, %v859
    %v861 = vsel %vm74, %v840, 0.0
    %v862 = vadd.f32 %v860, %v861
    %v863 = vsel %vm74, %v841, 0.0
    %v864 = vadd.f32 %v862, %v863
    %v865 = vsel %vm74, %v842, 0.0
    %v866 = vadd.f32 %v864, %v865
    %v867 = vsel %vm74, %v843, 0.0
    %v868 = vadd.f32 %v866, %v867
    %v869 = vsel %vm74, %v844, 0.0
    %v870 = vadd.f32 %v868, %v869
    %v871 = vsel %vm74, %v845, 0.0
    %v872 = vadd.f32 %v870, %v871
    %v873 = vsel %vm74, %v846, 0.0
    %v874 = vadd.f32 %v872, %v873
    %v875 = vsel %vm74, %v847, 0.0
    %v876 = vadd.f32 %v874, %v875
    %v877 = vsel %vm74, %v848, 0.0
    %v878 = vadd.f32 %v876, %v877
    %v879 = vsel %vm74, %v849, 0.0
    %v880 = vadd.f32 %v878, %v879
    %v881 = vrot.slane %v880, 4
    %v882 = vadd.f32 %v880, %v881
    %v883 = vrot.slane %v882, 2
    %v884 = vadd.f32 %v882, %v883
    %v885 = vrot.slane %v884, 1
    %v886 = vadd.f32 %v884, %v885
    %vm887 = vcmask 253952
    %888 = vst.msk [vmem:[#allocation7] sm:$0x1] %vm887, %v886
    // Predicated region
    $region18: #{tpu_custom_call.1} parent=1 // pred_check
      _
    $region19: #{tpu_custom_call.1} parent=1 // pred_check_branch
      %890 = sbr.rel (0) target = $region21
    $region20: #{tpu_custom_call.1} parent=1 // pred_region
      _
    $region21: #{tpu_custom_call.1} parent=1 // pred_fallthru
      _
    // Predicated region
    $region22: #{tpu_custom_call.1} parent=1 // pred_check
      _
    $region23: #{tpu_custom_call.1} parent=1 // pred_check_branch
      %892 = sbr.rel (0) target = $region25
    $region24: #{tpu_custom_call.1} parent=1 // pred_region
      %s894 = ssub.s32 2048, 2048
      %895 = vsyncadd [#allocation3], %s894
      %s896 = sshll.u32 [#allocation2], 4
      %s897 = int_to_ptr.vmem [resolvable:$true] %s896
      %902 = dma.vmem_to_hbm [thread:$0]  %s897, 2048, %s5, [#allocation3], 128, 128, 8
    $region25: #{tpu_custom_call.1} parent=1 // pred_fallthru
      _
    // Predicated region
    $region26: #{tpu_custom_call.1} parent=1 // pred_check
      _
    $region27: #{tpu_custom_call.1} parent=1 // pred_check_branch
      %904 = sbr.rel (0) target = $region29
    $region28: #{tpu_custom_call.1} parent=1 // pred_region
      %s906 = ssub.s32 2048, 2048
      %907 = vsyncadd [#allocation5], %s906
      %s908 = sshll.u32 [#allocation4], 4
      %s909 = int_to_ptr.vmem [resolvable:$true] %s908
      %914 = dma.vmem_to_hbm [thread:$0]  %s909, 2048, %s6, [#allocation5], 128, 128, 8
    $region29: #{tpu_custom_call.1} parent=1 // pred_fallthru
      _
    // Predicated region
    $region30: #{tpu_custom_call.1} parent=1 // pred_check
      _
    $region31: #{tpu_custom_call.1} parent=1 // pred_check_branch
      %916 = sbr.rel (0) target = $region33
    $region32: #{tpu_custom_call.1} parent=1 // pred_region
      _
    $region33: #{tpu_custom_call.1} parent=1 // pred_fallthru
      _
    // Predicated region
    $region34: #{tpu_custom_call.1} parent=1 // pred_check
      _
    $region35: #{tpu_custom_call.1} parent=1 // pred_check_branch
      %918 = sbr.rel (0) target = $region37
    $region36: #{tpu_custom_call.1} parent=1 // pred_region
      %s920 = ssub.s32 16, 16
      %921 = vsyncadd [#allocation5], %s920
      %s923 = sshll.u32 [#allocation6], 4
      %s924 = int_to_ptr.vmem [resolvable:$true] %s923
      %926 = dma.vmem_to_hbm [thread:$0]  %s924, 16, %s8, [#allocation5]
    $region37: #{tpu_custom_call.1} parent=1 // pred_fallthru
      _
    // Predicated region
    $region38: #{tpu_custom_call.1} parent=1 // pred_check
      _
    $region39: #{tpu_custom_call.1} parent=1 // pred_check_branch
      %928 = sbr.rel (0) target = $region41
    $region40: #{tpu_custom_call.1} parent=1 // pred_region
      %s930 = ssub.s32 16, 16
      %931 = vsyncadd [#allocation8], %s930
      %s933 = sshll.u32 [#allocation7], 4
      %s934 = int_to_ptr.vmem [resolvable:$true] %s933
      %936 = dma.vmem_to_hbm [thread:$0]  %s934, 16, %s9, [#allocation8]
    $region41: #{tpu_custom_call.1} parent=1 // pred_fallthru
      _
    // Predicated region
    $region42: #{tpu_custom_call.1} parent=1 // pred_check
      _
    $region43: #{tpu_custom_call.1} parent=1 // pred_check_branch
      %938 = sbr.rel (0) target = $region45
    $region44: #{tpu_custom_call.1} parent=1 // pred_region
      _
    $region45: #{tpu_custom_call.1} parent=1 // pred_fallthru
      _
    // Predicated region
    $region46: #{tpu_custom_call.1} parent=1 // pred_check
      _
    $region47: #{tpu_custom_call.1} parent=1 // pred_check_branch
      %940 = sbr.rel (0) target = $region49
    $region48: #{tpu_custom_call.1} parent=1 // pred_region
      %941 = dma.done [#allocation3], 2048
    $region49: #{tpu_custom_call.1} parent=1 // pred_fallthru
      _
    // Predicated region
    $region50: #{tpu_custom_call.1} parent=1 // pred_check
      _
    $region51: #{tpu_custom_call.1} parent=1 // pred_check_branch
      %943 = sbr.rel (0) target = $region53
    $region52: #{tpu_custom_call.1} parent=1 // pred_region
      %944 = dma.done [#allocation5], 2048
    $region53: #{tpu_custom_call.1} parent=1 // pred_fallthru
      _
    // Predicated region
    $region54: #{tpu_custom_call.1} parent=1 // pred_check
      _
    $region55: #{tpu_custom_call.1} parent=1 // pred_check_branch
      %946 = sbr.rel (0) target = $region57
    $region56: #{tpu_custom_call.1} parent=1 // pred_region
      _
    $region57: #{tpu_custom_call.1} parent=1 // pred_fallthru
      _
    // Predicated region
    $region58: #{tpu_custom_call.1} parent=1 // pred_check
      _
    $region59: #{tpu_custom_call.1} parent=1 // pred_check_branch
      %948 = sbr.rel (0) target = $region61
    $region60: #{tpu_custom_call.1} parent=1 // pred_region
      %949 = dma.done [#allocation5], 16
    $region61: #{tpu_custom_call.1} parent=1 // pred_fallthru
      _
    // Predicated region
    $region62: #{tpu_custom_call.1} parent=1 // pred_check
      _
    $region63: #{tpu_custom_call.1} parent=1 // pred_check_branch
      %951 = sbr.rel (0) target = $region65
    $region64: #{tpu_custom_call.1} parent=1 // pred_region
      %952 = dma.done [#allocation8], 16
    $region65: #{tpu_custom_call.1} parent=1 // pred_fallthru
      _
    %953 = vsyncpa [#allocation3], 1
    %954 = vsyncpa [#allocation5], 1
    %955 = vsyncpa [#allocation8], 1

</llo_original>
